<compile_context>
chip_gen: v7x
topology: tpu7x:2x2x1
jax: 0.10.0
libtpu: 0.0.40
codegen_flags: <defaults>
</compile_context>

<pallas_src>
import math
from functools import partial

import jax
import jax.numpy as jnp
import numpy as np
from jax import lax
from jax.experimental import pallas as pl
from jax.experimental.pallas import tpu as pltpu

# Full-precision f32 matmuls so the f32 Pallas path and the pure-JAX reference agree to
# fp rounding (the TPU default matmul precision is a single bf16 pass otherwise).
jax.config.update("jax_default_matmul_precision", "highest")

_VMEM_LIMIT = 32 * 1024 * 1024    # scoped VMEM requested from Mosaic (raises v5e's 16 MiB default)
_VMEM_BUDGET = 20 * 1024 * 1024   # planning budget for weight-resident paths (headroom under limit)


# ---------------------------------------------------------------------------
# Small helpers
# ---------------------------------------------------------------------------

def _round_up(x, m):
    return ((x + m - 1) // m) * m


def _sublane(dtype):
    # bf16 packs two rows per sublane -> round M tiles to 16; f32 -> 8.
    return 16 if jnp.dtype(dtype).itemsize < 4 else 8


def _pick_tm(M, per_row_bytes, fixed_bytes, sublane, tm_max=512):
    """Largest M-tile (multiple of `sublane`) whose double-buffered footprint, together
    with the fixed (weight/bias) footprint, fits the VMEM planning budget.  Returns None
    if even the smallest tile does not fit (caller falls back to the tiled matmul)."""
    tm = min(tm_max, _round_up(M, sublane))
    tm = max(_round_up(tm, sublane), sublane)
    while tm > sublane and fixed_bytes + 2 * tm * per_row_bytes > _VMEM_BUDGET:
        tm = max(_round_up(tm // 2, sublane), sublane)
    if fixed_bytes + 2 * tm * per_row_bytes > _VMEM_BUDGET:
        return None
    return tm


# ---------------------------------------------------------------------------
# Linear kernels
#   (a) weight-resident: weight/bias constant index_map -> read from HBM once
#   (b) tiled K-pipelined fallback with f32 VMEM accumulator
# ---------------------------------------------------------------------------

def _matmul_wres_kernel(x_ref, w_ref, o_ref):
    o_ref[...] = jnp.dot(x_ref[...], w_ref[...],
                         preferred_element_type=jnp.float32).astype(o_ref.dtype)


def _matmul_wres_bias_kernel(x_ref, w_ref, b_ref, o_ref):
    acc = jnp.dot(x_ref[...], w_ref[...], preferred_element_type=jnp.float32)
    o_ref[...] = (acc + b_ref[...].astype(jnp.float32)).astype(o_ref.dtype)


def _matmul_tiled_kernel(x_ref, w_ref, o_ref, acc_ref):
    @pl.when(pl.program_id(2) == 0)
    def _():
        acc_ref[...] = jnp.zeros_like(acc_ref)

    acc_ref[...] += jnp.dot(x_ref[...], w_ref[...],
                            preferred_element_type=jnp.float32)

    @pl.when(pl.program_id(2) == pl.num_programs(2) - 1)
    def _():
        o_ref[...] = acc_ref[...].astype(o_ref.dtype)


def _matmul_tiled_bias_kernel(x_ref, w_ref, b_ref, o_ref, acc_ref):
    @pl.when(pl.program_id(2) == 0)
    def _():
        acc_ref[...] = jnp.zeros_like(acc_ref)

    acc_ref[...] += jnp.dot(x_ref[...], w_ref[...],
                            preferred_element_type=jnp.float32)

    @pl.when(pl.program_id(2) == pl.num_programs(2) - 1)
    def _():
        o_ref[...] = (acc_ref[...] + b_ref[...].astype(jnp.float32)).astype(o_ref.dtype)


def pallas_matmul(x, w, bias=None, *, out_dtype=None, tm=512, tn=512, tk=512):
    """o = x @ w (+ bias).  x: (M, K), w: (K, O), bias: (1, O) or None."""
    M, K = x.shape
    Kw, O = w.shape
    assert K == Kw
    out_dtype = x.dtype if out_dtype is None else out_dtype
    sub = _sublane(x.dtype)
    xb = jnp.dtype(x.dtype).itemsize
    wb = jnp.dtype(w.dtype).itemsize
    ob = jnp.dtype(out_dtype).itemsize

    # ---- fast path: weight (and bias) VMEM-resident, read from HBM exactly once ----
    fixed = 2 * K * O * wb + (2 * 8 * O * 4 if bias is not None else 0)
    tm_res = _pick_tm(M, K * xb + O * ob, fixed, sub, tm_max=max(tm, sub))
    if tm_res is not None:
        Mp = _round_up(M, tm_res)
        xp = x if Mp == M else jnp.pad(x, ((0, Mp - M), (0, 0)))
        in_specs = [pl.BlockSpec((tm_res, K), lambda i: (i, 0)),
                    pl.BlockSpec((K, O), lambda i: (0, 0))]     # constant -> resident
        args = [xp, w]
        if bias is not None:
            in_specs.append(pl.BlockSpec((1, O), lambda i: (0, 0)))
            args.append(bias)
            kernel = _matmul_wres_bias_kernel
        else:
            kernel = _matmul_wres_kernel
        out = pl.pallas_call(
            kernel,
            out_shape=jax.ShapeDtypeStruct((Mp, O), out_dtype),
            grid=(Mp // tm_res,),
            in_specs=in_specs,
            out_specs=pl.BlockSpec((tm_res, O), lambda i: (i, 0)),
            compiler_params=pltpu.CompilerParams(
                dimension_semantics=("parallel",),
                vmem_limit_bytes=_VMEM_LIMIT),
        )(*args)
        return out if Mp == M else out[:M]

    # ---- general path: K-pipelined tiled matmul ----
    tm_e = min(tm, _round_up(M, sub))
    tk_e = min(tk, _round_up(K, 128))
    tn_e = min(tn, _round_up(O, 128))
    Mp, Kp, Op = _round_up(M, tm_e), _round_up(K, tk_e), _round_up(O, tn_e)

    xp = x if (Mp, Kp) == (M, K) else jnp.pad(x, ((0, Mp - M), (0, Kp - K)))
    wp = w if (Kp, Op) == (K, O) else jnp.pad(w, ((0, Kp - K), (0, Op - O)))

    in_specs = [pl.BlockSpec((tm_e, tk_e), lambda i, j, k: (i, k)),
                pl.BlockSpec((tk_e, tn_e), lambda i, j, k: (k, j))]
    args = [xp, wp]
    if bias is not None:
        bp = bias if Op == O else jnp.pad(bias, ((0, 0), (0, Op - O)))
        in_specs.append(pl.BlockSpec((1, tn_e), lambda i, j, k: (0, j)))
        args.append(bp)
        kernel = _matmul_tiled_bias_kernel
    else:
        kernel = _matmul_tiled_kernel

    out = pl.pallas_call(
        kernel,
        out_shape=jax.ShapeDtypeStruct((Mp, Op), out_dtype),
        grid=(Mp // tm_e, Op // tn_e, Kp // tk_e),
        in_specs=in_specs,
        out_specs=pl.BlockSpec((tm_e, tn_e), lambda i, j, k: (i, j)),
        scratch_shapes=[pltpu.VMEM((tm_e, tn_e), jnp.float32)],
        compiler_params=pltpu.CompilerParams(
            dimension_semantics=("parallel", "parallel", "arbitrary"),
            vmem_limit_bytes=_VMEM_LIMIT),
    )(*args)

    if (Mp, Op) != (M, O):
        out = out[:M, :O]
    return out


# ---------------------------------------------------------------------------
# Fused qkv projection: one (C, 3C) resident weight, three separate q/k/v outputs
# ---------------------------------------------------------------------------

def _qkv_proj_kernel(x_ref, w_ref, q_ref, k_ref, v_ref):
    C = q_ref.shape[-1]
    acc = jnp.dot(x_ref[...], w_ref[...], preferred_element_type=jnp.float32)
    q_ref[...] = acc[:, :C].astype(q_ref.dtype)
    k_ref[...] = acc[:, C:2 * C].astype(k_ref.dtype)
    v_ref[...] = acc[:, 2 * C:].astype(v_ref.dtype)


def pallas_qkv_proj(x, w_qkv, *, out_dtype=None):
    """x: (M, C), w_qkv: (C, 3C) -> (q, k, v) each (M, C)."""
    M, K = x.shape
    _, O3 = w_qkv.shape
    C = O3 // 3
    out_dtype = x.dtype if out_dtype is None else out_dtype
    sub = _sublane(x.dtype)
    xb = jnp.dtype(x.dtype).itemsize
    wb = jnp.dtype(w_qkv.dtype).itemsize
    ob = jnp.dtype(out_dtype).itemsize

    fixed = 2 * K * O3 * wb
    tm_res = _pick_tm(M, K * xb + O3 * ob, fixed, sub)
    if tm_res is None:
        # Weight too large for a resident buffer: tiled matmul, then split in XLA.
        qkv = pallas_matmul(x, w_qkv, out_dtype=out_dtype)
        return qkv[:, :C], qkv[:, C:2 * C], qkv[:, 2 * C:]

    Mp = _round_up(M, tm_res)
    xp = x if Mp == M else jnp.pad(x, ((0, Mp - M), (0, 0)))
    out_sds = jax.ShapeDtypeStruct((Mp, C), out_dtype)
    q, k, v = pl.pallas_call(
        _qkv_proj_kernel,
        out_shape=(out_sds, out_sds, out_sds),
        grid=(Mp // tm_res,),
        in_specs=[pl.BlockSpec((tm_res, K), lambda i: (i, 0)),
                  pl.BlockSpec((K, O3), lambda i: (0, 0))],      # resident weight
        out_specs=(pl.BlockSpec((tm_res, C), lambda i: (i, 0)),
                   pl.BlockSpec((tm_res, C), lambda i: (i, 0)),
                   pl.BlockSpec((tm_res, C), lambda i: (i, 0))),
        compiler_params=pltpu.CompilerParams(
            dimension_semantics=("parallel",),
            vmem_limit_bytes=_VMEM_LIMIT),
    )(xp, w_qkv)
    if Mp != M:
        q, k, v = q[:M], k[:M], v[:M]
    return q, k, v


# ---------------------------------------------------------------------------
# Positional softmax (batch-independent, one head per grid step, "parallel" axis)
# ---------------------------------------------------------------------------

def _pos_softmax_kernel(sig_ref, logits_ref, o_ref):
    """o[h] = sigmoid(gate[h]) * softmax(pos_logits[h], axis=-1)."""
    h = pl.program_id(0)
    x = logits_ref[0]                                        # (N, N) f32
    x = x - jnp.max(x, axis=-1, keepdims=True)
    e = jnp.exp(x)
    o_ref[0] = (sig_ref[h] * (e / jnp.sum(e, axis=-1, keepdims=True))).astype(o_ref.dtype)


def pallas_pos_softmax(pos_logits, sig, *, out_dtype=jnp.float32):
    H, N, _ = pos_logits.shape
    return pl.pallas_call(
        _pos_softmax_kernel,
        out_shape=jax.ShapeDtypeStruct((H, N, N), out_dtype),
        grid=(H,),
        in_specs=[pl.BlockSpec(memory_space=pltpu.MemorySpace.SMEM),     # sig (H,) scalars
                  pl.BlockSpec((1, N, N), lambda h: (h, 0, 0))],
        out_specs=pl.BlockSpec((1, N, N), lambda h: (h, 0, 0)),
        compiler_params=pltpu.CompilerParams(
            dimension_semantics=("parallel",),
            vmem_limit_bytes=_VMEM_LIMIT),
    )(sig, pos_logits)


# ---------------------------------------------------------------------------
# GPSA attention core: grid = (head_groups, B); lane-dense q/k/v/out blocks;
# positional block resident across the batch sweep; gating scalars in SMEM.
# ---------------------------------------------------------------------------

def _head_group(num_heads, head_dim, dim):
    """Smallest head group whose lane width (g*head_dim) is a multiple of 128, if it
    divides num_heads; otherwise all heads together (block width == full C)."""
    if dim % 128 == 0:
        g = 128 // math.gcd(head_dim, 128)
        if g <= num_heads and num_heads % g == 0:
            return g
    return num_heads


def _gpsa_attn_kernel(oms_ref, q_ref, k_ref, v_ref, pos_ref, o_ref, *,
                      heads_per_group, head_dim, scale, approx_recip, renormalize):
    gi = pl.program_id(0)

    def _div(num, den):
        if approx_recip:
            return num * pl.reciprocal(den, approx=True)
        return num / den

    # One lane-dense load per operand; per-head slicing happens on vreg values.
    q_all = q_ref[0]                                   # (N, gw) compute dtype
    k_all = k_ref[0]
    v_all = v_ref[0]

    for i in range(heads_per_group):                   # small static loop (<= 8 heads)
        lo = i * head_dim
        q = q_all[:, lo:lo + head_dim]
        k = k_all[:, lo:lo + head_dim]
        v = v_all[:, lo:lo + head_dim]

        # patch-score softmax (f32); contract last dims -> no k.T materialization
        s = lax.dot_general(q, k, (((1,), (1,)), ((), ())),
                            preferred_element_type=jnp.float32) * scale
        s = s - jnp.max(s, axis=-1, keepdims=True)
        e = jnp.exp(s)
        patch = _div(e, jnp.sum(e, axis=-1, keepdims=True))

        # gated blend with precomputed sigmoid(gate)*softmax(pos)
        attn = oms_ref[gi * heads_per_group + i] * patch + pos_ref[i].astype(jnp.float32)
        if renormalize:  # PyTorch parity; rows already sum to ~1 so this is optional
            attn = _div(attn, jnp.sum(attn, axis=-1, keepdims=True))

        out_h = lax.dot_general(attn.astype(v.dtype), v, (((1,), (0,)), ((), ())),
                                preferred_element_type=jnp.float32)
        # TODO(synk): a head-major (B, H, N, hd) layout would remove the remaining
        # in-register per-head relayouts here.
        o_ref[0, :, lo:lo + head_dim] = out_h.astype(o_ref.dtype)


def gpsa_attention(q, k, v, pos_gated, one_minus_sig, *,
                   num_heads, head_dim, scale, out_dtype, approx_recip, renormalize):
    """q/k/v: (B, N, C); pos_gated: (H, N, N); one_minus_sig: (H,) f32 -> (B, N, C)."""
    B, N, C = q.shape
    H = num_heads
    g = _head_group(H, head_dim, C)
    gw = g * head_dim
    G = H // g

    kernel = partial(_gpsa_attn_kernel, heads_per_group=g, head_dim=head_dim,
                     scale=scale, approx_recip=approx_recip, renormalize=renormalize)
    return pl.pallas_call(
        kernel,
        out_shape=jax.ShapeDtypeStruct((B, N, C), out_dtype),
        grid=(G, B),                                   # pos block resident across inner B sweep
        in_specs=[
            pl.BlockSpec(memory_space=pltpu.MemorySpace.SMEM),        # 1 - sigmoid(gate)
            pl.BlockSpec((1, N, gw), lambda gi, b: (b, 0, gi)),       # q group (lane dense)
            pl.BlockSpec((1, N, gw), lambda gi, b: (b, 0, gi)),       # k group
            pl.BlockSpec((1, N, gw), lambda gi, b: (b, 0, gi)),       # v group
            pl.BlockSpec((g, N, N), lambda gi, b: (gi, 0, 0)),        # gated pos softmax
        ],
        out_specs=pl.BlockSpec((1, N, gw), lambda gi, b: (b, 0, gi)),
        compiler_params=pltpu.CompilerParams(
            dimension_semantics=("parallel", "parallel"),
            vmem_limit_bytes=_VMEM_LIMIT),
    )(one_minus_sig, q, k, v, pos_gated)


# ---------------------------------------------------------------------------
# Parameter setup, rel_indices, forward
# ---------------------------------------------------------------------------

def get_rel_indices(num_patches):
    """JAX port of GPSA.get_rel_indices -> (N, N, 3) float32 (indx, indy, indd)."""
    img_size = int(num_patches ** 0.5)
    ind = jnp.arange(img_size)[None, :] - jnp.arange(img_size)[:, None]
    indx = jnp.tile(ind, (img_size, img_size))
    indy = jnp.repeat(jnp.repeat(ind, img_size, axis=0), img_size, axis=1)
    indd = indx ** 2 + indy ** 2
    return jnp.stack([indx, indy, indd], axis=-1).astype(jnp.float32)


def init_params(key, dim, num_heads):
    ks = jax.random.split(key, 6)
    std = 0.02
    return {
        "num_heads": num_heads,
        # PyTorch nn.Linear weight is (out, in); stored the same way here.
        "qk_w": (jax.random.normal(ks[0], (2 * dim, dim)) * std).astype(jnp.float32),
        "v_w": (jax.random.normal(ks[1], (dim, dim)) * std).astype(jnp.float32),
        "proj_w": (jax.random.normal(ks[2], (dim, dim)) * std).astype(jnp.float32),
        "proj_b": (jax.random.normal(ks[3], (dim,)) * std).astype(jnp.float32),
        "pos_w": (jax.random.normal(ks[4], (num_heads, 3)) * std).astype(jnp.float32),
        "pos_b": (jax.random.normal(ks[5], (num_heads,)) * std).astype(jnp.float32),
        "gating": jnp.ones((num_heads,), jnp.float32),
    }


def prepare_params(params, compute_dtype=jnp.float32):
    """One-time weight fusion / transposition (hoisted out of the forward)."""
    cdt = jnp.dtype(compute_dtype)
    return {
        "w_qkv": jnp.concatenate([params["qk_w"].T, params["v_w"].T], axis=1).astype(cdt),
        "proj_wT": params["proj_w"].T.astype(cdt),
        "proj_b2": params["proj_b"][None, :].astype(jnp.float32),
    }


def prepare_positional(params, num_patches, pos_dtype=jnp.float32):
    """Batch-independent gated positional softmax (once per N), plus 1 - sigmoid(gate)."""
    rel = get_rel_indices(num_patches)                                     # (N, N, 3)
    pos_logits = (rel @ params["pos_w"].T + params["pos_b"]).transpose(2, 0, 1)  # (H, N, N)
    sig = jax.nn.sigmoid(params["gating"]).astype(jnp.float32)
    pos_gated = pallas_pos_softmax(pos_logits.astype(jnp.float32), sig, out_dtype=pos_dtype)
    return pos_gated, (1.0 - sig).astype(jnp.float32)


def gpsa_forward(x, prep, pos_gated, one_minus_sig, *, num_heads,
                 compute_dtype=jnp.float32, out_dtype=jnp.float32, renormalize=True):
    B, N, C = x.shape
    hd = C // num_heads
    scale = hd ** (-0.5)
    cdt = jnp.dtype(compute_dtype)
    approx = cdt == jnp.dtype(jnp.bfloat16)

    # fused qk + v projection (weight VMEM-resident; q/k/v written separately)
    x2 = x.reshape(B * N, C).astype(cdt)
    q2, k2, v2 = pallas_qkv_proj(x2, prep["w_qkv"], out_dtype=cdt)
    q = q2.reshape(B, N, C)
    k = k2.reshape(B, N, C)
    v = v2.reshape(B, N, C)

    # attention core (attn_drop is identity at p=0)
    attn_out = gpsa_attention(q, k, v, pos_gated, one_minus_sig,
                              num_heads=num_heads, head_dim=hd, scale=scale,
                              out_dtype=cdt, approx_recip=approx,
                              renormalize=renormalize)                     # (B, N, C)

    # output projection (proj_drop is identity at p=0)
    out = pallas_matmul(attn_out.reshape(B * N, C), prep["proj_wT"], prep["proj_b2"],
                        out_dtype=out_dtype)
    return out.reshape(B, N, C)


# ---------------------------------------------------------------------------
# Pure-JAX reference (mirrors the PyTorch forward exactly) for validation
# ---------------------------------------------------------------------------

def gpsa_reference(x, params):
    B, N, C = x.shape
    H = params["num_heads"]
    hd = C // H
    scale = hd ** (-0.5)

    qk = x @ params["qk_w"].T
    qk = qk.reshape(B, N, 2, H, hd).transpose(2, 0, 3, 1, 4)
    q, k = qk[0], qk[1]

    rel = get_rel_indices(N)[None]                                    # (1, N, N, 3)
    pos = rel @ params["pos_w"].T + params["pos_b"]                   # (1, N, N, H)
    pos = jnp.broadcast_to(pos, (B, N, N, H)).transpose(0, 3, 1, 2)   # (B, H, N, N)

    patch = jax.nn.softmax(jnp.einsum("bhnd,bhmd->bhnm", q, k) * scale, axis=-1)
    pos = jax.nn.softmax(pos, axis=-1)
    sig = jax.nn.sigmoid(params["gating"]).reshape(1, H, 1, 1)
    attn = (1.0 - sig) * patch + sig * pos
    attn = attn / jnp.sum(attn, axis=-1, keepdims=True)

    v = (x @ params["v_w"].T).reshape(B, N, H, hd).transpose(0, 2, 1, 3)
    o = jnp.einsum("bhnm,bhmd->bhnd", attn, v).transpose(0, 2, 1, 3).reshape(B, N, C)
    return o @ params["proj_w"].T + params["proj_b"]


# ---------------------------------------------------------------------------

if __name__ == "__main__":
    B, N, C, H = 2, 16, 32, 8            # N = 16 -> img_size 4; head_dim = 4
    key = jax.random.PRNGKey(0)
    kx, kp = jax.random.split(key)
    x = jax.random.normal(kx, (B, N, C), dtype=jnp.float32)
    params = init_params(kp, C, H)

    ref = gpsa_reference(x, params)

    # f32 parity path: strict check against the PyTorch-mirroring reference.
    prep32 = prepare_params(params, jnp.float32)
    pos32, oms = prepare_positional(params, N, pos_dtype=jnp.float32)
    out_f32 = jax.block_until_ready(
        gpsa_forward(x, prep32, pos32, oms, num_heads=H, compute_dtype=jnp.float32))
    np.testing.assert_allclose(np.asarray(out_f32), np.asarray(ref), rtol=2e-4, atol=2e-4)

    # bf16 MXU path (f32 accumulation + f32 softmax math, bf16 pos storage): loose check.
    prep16 = prepare_params(params, jnp.bfloat16)
    pos16, oms16 = prepare_positional(params, N, pos_dtype=jnp.bfloat16)
    out_bf16 = jax.block_until_ready(
        gpsa_forward(x, prep16, pos16, oms16, num_heads=H, compute_dtype=jnp.bfloat16))
    np.testing.assert_allclose(np.asarray(out_bf16), np.asarray(ref), rtol=1.5e-1, atol=2e-2)

    print("KERNEL_OK")
</pallas_src>

<mosaic_0001>
module attributes {stable_mosaic.version = 11 : i64} {
  func.func @_pos_softmax_kernel(%arg0: i32, %arg1: memref<8xf32, #tpu.memory_space<smem>>, %arg2: memref<1x16x16xf32, #tpu.memory_space<vmem>>, %arg3: memref<1x16x16xf32, #tpu.memory_space<vmem>>) attributes {dimension_semantics = [#tpu.dimension_semantics<parallel>], iteration_bounds = array<i64: 8>, scalar_prefetch = 0 : i64, scratch_operands = 0 : i64, tpu.core_type = #tpu.core_type<tc>, window_params = [{transform_indices = @transform_0, window_bounds = array<i64: 8>}, {transform_indices = @transform_1, window_bounds = array<i64: 1, 16, 16>}, {transform_indices = @transform_2, window_bounds = array<i64: 1, 16, 16>}]} {
    %c0 = arith.constant 0 : index
    %c0_0 = arith.constant 0 : index
    %c0_1 = arith.constant 0 : index
    %0 = vector.load %arg2[%c0, %c0_0, %c0_1] : memref<1x16x16xf32, #tpu.memory_space<vmem>>, vector<1x16x16xf32>
    %1 = vector.shape_cast %0 : vector<1x16x16xf32> to vector<16x16xf32>
    %cst = arith.constant dense<0xFF800000> : vector<16xf32>
    %2 = vector.multi_reduction <maximumf>, %1, %cst [1] : vector<16x16xf32> to vector<16xf32>
    %3 = vector.shape_cast %2 : vector<16xf32> to vector<16x1xf32>
    %4 = vector.broadcast %3 : vector<16x1xf32> to vector<16x16xf32>
    %5 = arith.subf %1, %4 : vector<16x16xf32>
    %6 = math.exp %5 : vector<16x16xf32>
    %7 = arith.index_cast %arg0 : i32 to index
    %8 = memref.load %arg1[%7] : memref<8xf32, #tpu.memory_space<smem>>
    %cst_2 = arith.constant dense<0.000000e+00> : vector<16xf32>
    %9 = vector.multi_reduction <add>, %6, %cst_2 [1] : vector<16x16xf32> to vector<16xf32>
    %10 = vector.shape_cast %9 : vector<16xf32> to vector<16x1xf32>
    %11 = vector.broadcast %10 : vector<16x1xf32> to vector<16x16xf32>
    %12 = arith.divf %6, %11 : vector<16x16xf32>
    %13 = vector.broadcast %8 : f32 to vector<16x16xf32>
    %14 = arith.mulf %13, %12 : vector<16x16xf32>
    %c0_3 = arith.constant 0 : index
    %c0_4 = arith.constant 0 : index
    %c0_5 = arith.constant 0 : index
    %15 = vector.load %arg3[%c0_3, %c0_4, %c0_5] : memref<1x16x16xf32, #tpu.memory_space<vmem>>, vector<1x16x16xf32>
    %16 = vector.shape_cast %15 : vector<1x16x16xf32> to vector<16x16xf32>
    %17 = vector.shape_cast %14 : vector<16x16xf32> to vector<1x16x16xf32>
    tpu.vector_store %arg3[%c0_3, %c0_4, %c0_5], %17 {strides = array<i32>} : memref<1x16x16xf32, #tpu.memory_space<vmem>>, vector<1x16x16xf32>,
    return
  }
  func.func @transform_0(%arg0: i32) -> i32 {
    %c0_i32 = arith.constant 0 : i32
    %c0_i32_0 = arith.constant 0 : i32
    return %c0_i32 : i32
  }
  func.func @transform_1(%arg0: i32) -> (i32, i32, i32) {
    %c0_i32 = arith.constant 0 : i32
    %c0_i32_0 = arith.constant 0 : i32
    %c0_i32_1 = arith.constant 0 : i32
    return %arg0, %c0_i32, %c0_i32_0 : i32, i32, i32
  }
  func.func @transform_2(%arg0: i32) -> (i32, i32, i32) {
    %c0_i32 = arith.constant 0 : i32
    %c0_i32_0 = arith.constant 0 : i32
    %c0_i32_1 = arith.constant 0 : i32
    return %arg0, %c0_i32, %c0_i32_0 : i32, i32, i32
  }
}

</mosaic_0001>

<llo_original>
// kernel: tpu_custom_call.1
$region0: #{tpu_custom_call.1}
  #allocation0 [shape = 'u32[]', space=smem, size = 0x4, offset = 0x4, fixed_abs, tag = 'smem constant byte address 0x4 - core index']
  #allocation1 [shape = 'u32[144,128]{1,0:T(1,128)}', space=vmem, size = 0x12000, scoped, tag = 'internal scratch']
  %s0 = inlined_call_operand.hbm [shape: f32[8], index: 0, kind: input, shape index: {}]
  %s1 = inlined_call_operand.hbm [shape: f32[8,16,16], index: 1, kind: input, shape index: {}]
  %s2 = inlined_call_operand.hbm [shape: f32[8,16,16], index: 2, kind: output, shape index: {}]
  %s3 = sld [smem:[#allocation0]]
  $region49: #{tpu_custom_call.1} parent=0
    _
  %s5 = ssub.s32 1, %s3
  %s6 = scalar_select 0, %s5, %s3
  $region1: #{tpu_custom_call.1} parent=0
    #allocation2 [shape = 'u8[512]{0}', space=smem, size = 0x200, scoped, tag = 'input window, operand 0, single buffered']
    #allocation3 [shape = 's32[2]{0}', space=sflag, size = 0x8, scoped, tag = 'scoped memory for tpu_custom_call.1']
    #allocation4 [shape = 's32[2]{0}', space=sflag, size = 0x8, scoped, tag = 'scoped memory for tpu_custom_call.1']
    #allocation5 [shape = 's32[2]{0}', space=sflag, size = 0x8, scoped, tag = 'scoped memory for tpu_custom_call.1']
    #allocation6 [shape = 'u8[16384]{0}', space=vmem, size = 0x4000, scoped, tag = 'input window, operand 1']
    #allocation7 [shape = 'u8[16384]{0}', space=vmem, size = 0x4000, scoped, tag = 'output window, operand 0']
    %7 = vsyncpa [#allocation5], 0
    %8 = vsyncpa [#allocation3], 0
    %s9 = scalar_lea.sflag [#allocation3], 1
    %10 = vsyncpa %s9, 0
    %11 = vsyncpa [#allocation4], 0
    %s12 = scalar_lea.sflag [#allocation4], 1
    %13 = vsyncpa %s12, 0
    loop: start=0, step=1, limit=10
    $region2: #{tpu_custom_call.1} parent=1 // loop_pre_header
      _
    $region3: #{tpu_custom_call.1} parent=1 // loop_header
      %s15 = sphi 0, %s19
      %p16 = scmp.ge.s32.totalorder %s15, 10
      %s23 = sphi 0, %s23
      %s25 = sphi 0, %s23
      %s26 = sphi 0, %s25
      %s40 = sphi 0, %s26
      %s46 = sphi 0, %s48
      %s49 = sphi 0, %s46
      %s50 = sphi 0, %s49
      %s66 = sphi 0, %s50
      %s72 = sphi 0, %s74
      %s75 = sphi 0, %s72
      %s76 = sphi 0, %s75
      %s92 = sphi 0, %s76
    $region4: #{tpu_custom_call.1} parent=1 // loop_header_branch
      %18 = sbr.rel (%p16) target = $region8
    $region5: #{tpu_custom_call.1} parent=1 // loop_body
      %s20 = ssub.s32 %s15, 1
      %s21 = ssub.s32 %s15, 2
      %s22 = sadd.s32 %s15, 1
      %s24 = sadd.s32 %s23, 1
      %p27 = scmp.eq.s32.totalorder %s15, 7
      %p28 = scmp.ne.s32.totalorder %s23, %s25
      %p29 = scmp.eq.s32.totalorder %s15, 0
      %p30 = por %p28, %p29
      %p31 = scmp.ne.s32.totalorder %s23, %s25
      %p32 = scmp.eq.s32.totalorder %s20, 7
      %p33 = por %p31, %p32
      %p34 = scmp.ne.s32.totalorder %s25, %s26
      %p35 = scmp.eq.s32.totalorder %s20, 0
      %p36 = por %p34, %p35
      %p37 = scmp.ne.s32.totalorder %s25, %s26
      %p38 = scmp.eq.s32.totalorder %s21, 7
      %p39 = por %p37, %p38
      %p41 = scmp.ne.s32.totalorder %s26, %s40
      %p42 = scmp.eq.s32.totalorder %s21, 0
      %p43 = por %p41, %p42
      %s44 = ssub.s32 %s15, %s22
      %p45 = scmp.eq.s32.totalorder %s44, 0
      %s47 = sadd.s32 %s46, 1
      %s48 = scalar_select %p45, %s46, %s47
      %p51 = pneg %p45
      %p52 = scmp.eq.s32.totalorder %s15, 7
      %p53 = por %p51, %p52
      %p54 = scmp.ne.s32.totalorder %s46, %s49
      %p55 = scmp.eq.s32.totalorder %s15, 0
      %p56 = por %p54, %p55
      %p57 = scmp.ne.s32.totalorder %s46, %s49
      %p58 = scmp.eq.s32.totalorder %s20, 7
      %p59 = por %p57, %p58
      %p60 = scmp.ne.s32.totalorder %s49, %s50
      %p61 = scmp.eq.s32.totalorder %s20, 0
      %p62 = por %p60, %p61
      %p63 = scmp.ne.s32.totalorder %s49, %s50
      %p64 = scmp.eq.s32.totalorder %s21, 7
      %p65 = por %p63, %p64
      %p67 = scmp.ne.s32.totalorder %s50, %s66
      %p68 = scmp.eq.s32.totalorder %s21, 0
      %p69 = por %p67, %p68
      %s70 = ssub.s32 %s15, %s22
      %p71 = scmp.eq.s32.totalorder %s70, 0
      %s73 = sadd.s32 %s72, 1
      %s74 = scalar_select %p71, %s72, %s73
      %p77 = pneg %p71
      %p78 = scmp.eq.s32.totalorder %s15, 7
      %p79 = por %p77, %p78
      %p80 = scmp.ne.s32.totalorder %s72, %s75
      %p81 = scmp.eq.s32.totalorder %s15, 0
      %p82 = por %p80, %p81
      %p83 = scmp.ne.s32.totalorder %s72, %s75
      %p84 = scmp.eq.s32.totalorder %s20, 7
      %p85 = por %p83, %p84
      %p86 = scmp.ne.s32.totalorder %s75, %s76
      %p87 = scmp.eq.s32.totalorder %s20, 0
      %p88 = por %p86, %p87
      %p89 = scmp.ne.s32.totalorder %s75, %s76
      %p90 = scmp.eq.s32.totalorder %s21, 7
      %p91 = por %p89, %p90
      %p93 = scmp.ne.s32.totalorder %s76, %s92
      %p94 = scmp.eq.s32.totalorder %s21, 0
      %p95 = por %p93, %p94
      %p96 = scmp.le.s32.totalorder 1, %s15
      %p97 = scmp.lt.s32.totalorder %s15, 9
      %p98 = pnand %p96, %p97
      %p99 = pneg %p98
      // Predicated region
      $region9: #{tpu_custom_call.1} parent=5 // pred_check
        _
      $region10: #{tpu_custom_call.1} parent=5 // pred_check_branch
        %101 = sbr.rel (%p98) target = $region12
      $region11: #{tpu_custom_call.1} parent=5 // pred_region
        %s102 = ssub.s32 %s15, 1
        // Predicated region
        $region13: #{tpu_custom_call.1} parent=11 // pred_check
          %p103 = pneg %p36
        $region14: #{tpu_custom_call.1} parent=11 // pred_check_branch
          %105 = sbr.rel (%p103) target = $region16
        $region15: #{tpu_custom_call.1} parent=11 // pred_region
          %s107 = ssub.s32 16, 16
          %108 = vsyncadd [#allocation5], %s107
          %111 = dma.hbm_to_smem %s0, 16, [#allocation2], [#allocation5]
        $region16: #{tpu_custom_call.1} parent=11 // pred_fallthru
          _
      $region12: #{tpu_custom_call.1} parent=5 // pred_fallthru
        _
      %p112 = scmp.lt.s32.totalorder %s15, 8
      // Predicated region
      $region17: #{tpu_custom_call.1} parent=5 // pred_check
        %p113 = pneg %p112
      $region18: #{tpu_custom_call.1} parent=5 // pred_check_branch
        %115 = sbr.rel (%p113) target = $region20
      $region19: #{tpu_custom_call.1} parent=5 // pred_region
        // Predicated region
        $region21: #{tpu_custom_call.1} parent=19 // pred_check
          %p116 = pneg %p56
        $region22: #{tpu_custom_call.1} parent=19 // pred_check_branch
          %118 = sbr.rel (%p116) target = $region24
        $region23: #{tpu_custom_call.1} parent=19 // pred_region
          %s119 = sand.u32 %s46, 1
          %s120 = scalar_lea.sflag [#allocation3], %s119
          %s121 = sand.u32 %s46, 1
          %s122 = smul.addr %s121, 16
          %s123 = scalar_lea.vmem [#allocation6], %s122
          %s125 = ssub.s32 256, 256
          %126 = vsyncadd %s120, %s125
          %s127 = smul.addr %s15, 2
          %s128 = smul.addr %s127, 128
          %s129 = scalar_lea.hbm %s1, %s128
          %s130 = sshll.u32 %s123, 4
          %s131 = int_to_ptr.vmem [resolvable:$true] %s130
          %136 = dma.hbm_to_vmem [thread:$0]  %s129, 256, %s131, %s120, 128, 128, 8
        $region24: #{tpu_custom_call.1} parent=19 // pred_fallthru
          _
      $region20: #{tpu_custom_call.1} parent=5 // pred_fallthru
        _
      %p137 = scmp.le.s32.totalorder 1, %s15
      %p138 = scmp.lt.s32.totalorder %s15, 9
      %p139 = pnand %p137, %p138
      %p140 = pneg %p139
      // Predicated region
      $region25: #{tpu_custom_call.1} parent=5 // pred_check
        _
      $region26: #{tpu_custom_call.1} parent=5 // pred_check_branch
        %142 = sbr.rel (%p139) target = $region28
      $region27: #{tpu_custom_call.1} parent=5 // pred_region
        %s143 = ssub.s32 %s15, 1
        // Predicated region
        $region29: #{tpu_custom_call.1} parent=27 // pred_check
          %p144 = pneg %p36
        $region30: #{tpu_custom_call.1} parent=27 // pred_check_branch
          %146 = sbr.rel (%p144) target = $region32
        $region31: #{tpu_custom_call.1} parent=27 // pred_region
          %147 = dma.done [#allocation5], 16
        $region32: #{tpu_custom_call.1} parent=27 // pred_fallthru
          _
        %s148 = sand.u32 %s49, 1
        %s149 = scalar_lea.sflag [#allocation3], %s148
        %s150 = sand.u32 %s49, 1
        %s151 = smul.addr %s150, 16
        %s152 = scalar_lea.vmem [#allocation6], %s151
        // Predicated region
        $region33: #{tpu_custom_call.1} parent=27 // pred_check
          %p153 = pneg %p62
        $region34: #{tpu_custom_call.1} parent=27 // pred_check_branch
          %155 = sbr.rel (%p153) target = $region36
        $region35: #{tpu_custom_call.1} parent=27 // pred_region
          %156 = dma.done %s149, 256
        $region36: #{tpu_custom_call.1} parent=27 // pred_fallthru
          _
        %157 = sfence
        %p158 = pneg %p36
        %p159 = pneg %p33
        %s160 = sand.u32 %s49, 1
        %s161 = scalar_lea.sflag [#allocation3], %s160
        %s162 = sand.u32 %s49, 1
        %s163 = smul.addr %s162, 16
        %s164 = scalar_lea.vmem [#allocation6], %s163
        %p165 = pneg %p62
        %p166 = pneg %p59
        %p167 = pneg %p88
        %p168 = pneg %p85
        %s169 = sand.u32 %s75, 1
        %s170 = scalar_lea.sflag [#allocation4], %s169
        %s171 = sand.u32 %s75, 1
        %s172 = smul.addr %s171, 16
        %s173 = scalar_lea.vmem [#allocation7], %s172
        %v174 = vld [vmem:[%s152] sm:$0xff]
        %v175 = vld [vmem:[%s152 + $0x8] sm:$0xff]
        %vm176 = vcmask 130048
        %v177 = vsel %vm176, %v174, -inf
        %178 = vmax.xlane.f32.xlu0 %v177
        %v179 = vpop.xlane.xlu0 %178
        %v180 = vsel %vm176, %v175, -inf
        %181 = vmax.xlane.f32.xlu0 %v180
        %v182 = vpop.xlane.xlu0 %181
        %v183 = vsub.f32 %v174, %v179
        %v184 = vsub.f32 %v175, %v182
        %v185 = vmul.f32 %v183, 1.442695
        %v186 = vpow.pop %v185
        %v187 = vmul.f32 %v184, 1.442695
        %v188 = vpow.pop %v187
        %s189 = sld [smem:[#allocation2 + %s20]]
        %v190 = vsel %vm176, %v186, 0.0
        %191 = vadd.xlane.f32.xlu0 %v190
        %v192 = vpop.xlane.xlu0 %191
        %v193 = vsel %vm176, %v188, 0.0
        %194 = vadd.xlane.f32.xlu0 %v193
        %v195 = vpop.xlane.xlu0 %194
        %v196 = vrcp.pop %v192
        %v197 = vmul.f32 %v186, %v196
        %v198 = vrcp.pop %v195
        %v199 = vmul.f32 %v188, %v198
        %v200 = vstv %s189
        %v201 = vmul.f32 %v200, %v197
        %v202 = vmul.f32 %v200, %v199
        %203 = vst.msk [vmem:[%s173] sm:$0xff] %vm176, %v201
        %204 = vst.msk [vmem:[%s173 + $0x8] sm:$0xff] %vm176, %v202
        %s205 = sand.u32 %s75, 1
        %s206 = scalar_lea.sflag [#allocation4], %s205
        %s207 = sand.u32 %s75, 1
        %s208 = smul.addr %s207, 16
        %s209 = scalar_lea.vmem [#allocation7], %s208
        // Predicated region
        $region37: #{tpu_custom_call.1} parent=27 // pred_check
          %p210 = pneg %p85
        $region38: #{tpu_custom_call.1} parent=27 // pred_check_branch
          %212 = sbr.rel (%p210) target = $region40
        $region39: #{tpu_custom_call.1} parent=27 // pred_region
          %s214 = ssub.s32 256, 256
          %215 = vsyncadd %s206, %s214
          %s216 = smul.addr %s20, 2
          %s217 = smul.addr %s216, 128
          %s218 = scalar_lea.hbm %s2, %s217
          %s219 = sshll.u32 %s209, 4
          %s220 = int_to_ptr.vmem [resolvable:$true] %s219
          %225 = dma.vmem_to_hbm [thread:$0]  %s220, 256, %s218, %s206, 128, 128, 8
        $region40: #{tpu_custom_call.1} parent=27 // pred_fallthru
          _
      $region28: #{tpu_custom_call.1} parent=5 // pred_fallthru
        _
      %p226 = scmp.le.s32.totalorder 2, %s15
      // Predicated region
      $region41: #{tpu_custom_call.1} parent=5 // pred_check
        %p227 = pneg %p226
      $region42: #{tpu_custom_call.1} parent=5 // pred_check_branch
        %229 = sbr.rel (%p227) target = $region44
      $region43: #{tpu_custom_call.1} parent=5 // pred_region
        %s230 = ssub.s32 %s15, 2
        // Predicated region
        $region45: #{tpu_custom_call.1} parent=43 // pred_check
          %p231 = pneg %p91
        $region46: #{tpu_custom_call.1} parent=43 // pred_check_branch
          %233 = sbr.rel (%p231) target = $region48
        $region47: #{tpu_custom_call.1} parent=43 // pred_region
          %s234 = sand.u32 %s76, 1
          %s235 = scalar_lea.sflag [#allocation4], %s234
          %s236 = sand.u32 %s76, 1
          %s237 = smul.addr %s236, 16
          %s238 = scalar_lea.vmem [#allocation7], %s237
          %239 = dma.done %s235, 256
        $region48: #{tpu_custom_call.1} parent=43 // pred_fallthru
          _
      $region44: #{tpu_custom_call.1} parent=5 // pred_fallthru
        _
    $region6: #{tpu_custom_call.1} parent=1 // loop_footer
      %s19 = sadd.s32 1, %s15
    $region7: #{tpu_custom_call.1} parent=1 // loop_footer_branch
      %14 = sbr.rel target = $region3
    $region8: #{tpu_custom_call.1} parent=1 // loop_exit
      _
    %240 = vsyncpa [#allocation3], 1
    %s241 = scalar_lea.sflag [#allocation3], 1
    %242 = vsyncpa %s241, 1
    %243 = vsyncpa [#allocation4], 1
    %s244 = scalar_lea.sflag [#allocation4], 1
    %245 = vsyncpa %s244, 1
    %246 = vsyncpa [#allocation5], 1
    %s247 = scalar_lea.sflag [#allocation5], 1
    %248 = vsyncpa %s247, 1

</llo_original>
